<compile_context>
chip_gen: v5e
topology: v5e:2x2
jax: 0.10.0
libtpu: 0.0.40
codegen_flags: <defaults>
</compile_context>

<pallas_src>
import functools

import jax
import jax.numpy as jnp
from jax.experimental import pallas as pl
from jax.experimental.pallas import tpu as pltpu


def _round_up(v, m):
    return (v + m - 1) // m * m


def _self_attn_lin_kernel(x_ref, w1_ref, b1_ref, w2_ref, b2_ref, o_ref, *,
                          compute_dtype):
    # Linear 1 (+ReLU): MXU matmul in compute_dtype, f32 accumulation.
    xc = x_ref[...].astype(compute_dtype)
    h = jnp.dot(xc, w1_ref[...], preferred_element_type=jnp.float32) + b1_ref[...]
    h = jnp.maximum(h, 0.0)

    # Linear 2
    x_proj = (jnp.dot(h.astype(compute_dtype), w2_ref[...],
                      preferred_element_type=jnp.float32) + b2_ref[...])

    # Sigmoid gate (EUP), then gate the input.  Re-read x_ref here (cheap vld)
    # instead of keeping a full f32 copy of x alive across both matmuls.
    scale = jax.nn.sigmoid(x_proj)
    o_ref[...] = (x_ref[...].astype(jnp.float32) * scale).astype(o_ref.dtype)


@functools.partial(jax.jit, static_argnames=("tm", "precision"))
def self_attention_lin(x, w1_t, b1, w2_t, b2, *, tm=None, precision="bfloat16"):
    """x: (..., c_in); w1_t: (c_in, c_in//2); w2_t: (c_in//2, c_in)."""
    orig_shape = x.shape
    c_in = orig_shape[-1]
    hidden = w1_t.shape[1]

    compute_dtype = jnp.bfloat16 if precision == "bfloat16" else jnp.float32
    x_item = jnp.dtype(x.dtype).itemsize
    w_item = jnp.dtype(compute_dtype).itemsize

    # Lane-dense padding of the feature / hidden axes (multiples of 128).
    LANES = 128
    c_pad = _round_up(c_in, LANES)
    h_pad = _round_up(hidden, LANES)

    x2d = x.reshape(-1, c_in)
    M = x2d.shape[0]

    # Row tile: as large as possible (<=512) while keeping the double-buffered
    # in/out activation tiles within ~24 MiB of VMEM.
    if tm is None:
        tm_cap = max(8, ((24 << 20) // (4 * c_pad * x_item)) // 8 * 8)
        tm = min(512, _round_up(M, 8), tm_cap)
    M_pad = _round_up(M, tm)

    # Zero-pad rows (ragged leading shapes) and feature lanes; padded rows /
    # lanes are sliced off on the way out.  Zero weight rows/cols guarantee the
    # padded lanes contribute nothing to the real outputs.
    x2d_p = jnp.pad(x2d, ((0, M_pad - M), (0, c_pad - c_in)))
    w1_p = jnp.pad(w1_t, ((0, c_pad - c_in), (0, h_pad - hidden))).astype(compute_dtype)
    b1_p = jnp.pad(b1, (0, h_pad - hidden)).reshape(1, h_pad).astype(jnp.float32)
    w2_p = jnp.pad(w2_t, ((0, h_pad - hidden), (0, c_pad - c_in))).astype(compute_dtype)
    b2_p = jnp.pad(b2, (0, c_pad - c_in)).reshape(1, c_pad).astype(jnp.float32)

    # VMEM budget: double-buffered in/out tiles + (double-buffered) weights +
    # headroom for compiler temporaries.  Clamp to [32 MiB, 64 MiB] so it is
    # valid on every chip (v7x physical VMEM is 64 MiB).
    # TODO(synk): for c_in >~ 2.5K on v7x, tile W2's output dim (extra grid
    # axis + cached h scratch) so resident weights fit the 64 MiB VMEM.
    io_bytes = 2 * 2 * tm * c_pad * x_item
    wt_bytes = 2 * (c_pad * h_pad + h_pad * c_pad) * w_item
    vmem_limit = min(max(io_bytes + wt_bytes + (16 << 20), 32 << 20), 64 << 20)

    cost = pl.CostEstimate(
        flops=4 * M_pad * c_pad * h_pad,               # two matmuls
        transcendentals=M_pad * c_pad,                 # sigmoid
        bytes_accessed=(2 * M_pad * c_pad * x_item     # x in + out
                        + (c_pad * h_pad + h_pad * c_pad) * w_item
                        + (h_pad + c_pad) * 4),
    )

    out2d_p = pl.pallas_call(
        functools.partial(_self_attn_lin_kernel, compute_dtype=compute_dtype),
        out_shape=jax.ShapeDtypeStruct((M_pad, c_pad), x.dtype),
        grid_spec=pltpu.PrefetchScalarGridSpec(
            num_scalar_prefetch=0,
            grid=(M_pad // tm,),
            in_specs=[
                pl.BlockSpec((tm, c_pad), lambda i: (i, 0)),      # x rows tile
                pl.BlockSpec((c_pad, h_pad), lambda i: (0, 0)),   # W1^T (resident)
                pl.BlockSpec((1, h_pad), lambda i: (0, 0)),       # b1
                pl.BlockSpec((h_pad, c_pad), lambda i: (0, 0)),   # W2^T (resident)
                pl.BlockSpec((1, c_pad), lambda i: (0, 0)),       # b2
            ],
            out_specs=pl.BlockSpec((tm, c_pad), lambda i: (i, 0)),
        ),
        compiler_params=pltpu.CompilerParams(
            dimension_semantics=("parallel",),
            vmem_limit_bytes=int(vmem_limit),
        ),
        cost_estimate=cost,
    )(x2d_p, w1_p, b1_p, w2_p, b2_p)

    return out2d_p[:M, :c_in].reshape(orig_shape)


def init_params(key, c_in):
    """Deterministic init mimicking PyTorch nn.Linear default (uniform +-1/sqrt(fan_in))."""
    hidden = c_in // 2
    k1, k2, k3, k4 = jax.random.split(key, 4)
    bound1 = 1.0 / jnp.sqrt(c_in)
    bound2 = 1.0 / jnp.sqrt(hidden)
    # Stored already transposed: (in, out)
    w1_t = jax.random.uniform(k1, (c_in, hidden), jnp.float32, -bound1, bound1)
    b1 = jax.random.uniform(k2, (hidden,), jnp.float32, -bound1, bound1)
    w2_t = jax.random.uniform(k3, (hidden, c_in), jnp.float32, -bound2, bound2)
    b2 = jax.random.uniform(k4, (c_in,), jnp.float32, -bound2, bound2)
    return w1_t, b1, w2_t, b2


def reference(x, w1_t, b1, w2_t, b2):
    h = jnp.maximum(x @ w1_t + b1, 0.0)
    x_proj = h @ w2_t + b2
    return x * jax.nn.sigmoid(x_proj)


if __name__ == "__main__":
    key = jax.random.PRNGKey(0)
    kx, kx2, kp = jax.random.split(key, 3)

    batch, seq, c_in = 2, 8, 32
    x = jax.random.normal(kx, (batch, seq, c_in), jnp.float32)
    w1_t, b1, w2_t, b2 = init_params(kp, c_in)

    ref = reference(x, w1_t, b1, w2_t, b2)

    # f32 precision path: must match the PyTorch-equivalent reference tightly.
    out_f32 = self_attention_lin(x, w1_t, b1, w2_t, b2, precision="float32")
    out_f32 = jax.block_until_ready(out_f32)
    assert out_f32.shape == x.shape
    assert jnp.allclose(out_f32, ref, atol=1e-5, rtol=1e-5), "f32 mismatch vs reference"

    # Default (bf16-matmul, f32-accumulate) path: same semantics, bf16-level error.
    out_bf16 = self_attention_lin(x, w1_t, b1, w2_t, b2)
    out_bf16 = jax.block_until_ready(out_bf16)
    assert out_bf16.shape == x.shape
    assert jnp.allclose(out_bf16, ref, atol=1e-1, rtol=1e-1), "bf16 mismatch vs reference"

    # Ragged leading shape (exercises row padding / cdiv-style grid).
    x_odd = jax.random.normal(kx2, (3, 7, c_in), jnp.float32)
    out_odd = self_attention_lin(x_odd, w1_t, b1, w2_t, b2, precision="float32")
    out_odd = jax.block_until_ready(out_odd)
    assert out_odd.shape == x_odd.shape
    assert jnp.allclose(out_odd, reference(x_odd, w1_t, b1, w2_t, b2),
                        atol=1e-5, rtol=1e-5), "ragged-shape mismatch vs reference"

    print("KERNEL_OK")
</pallas_src>

<mosaic_0001>
module attributes {stable_mosaic.version = 11 : i64} {
  func.func @_self_attn_lin_kernel(%arg0: i32, %arg1: memref<16x128xf32, #tpu.memory_space<vmem>>, %arg2: memref<128x128xf32, #tpu.memory_space<vmem>>, %arg3: memref<1x128xf32, #tpu.memory_space<vmem>>, %arg4: memref<128x128xf32, #tpu.memory_space<vmem>>, %arg5: memref<1x128xf32, #tpu.memory_space<vmem>>, %arg6: memref<16x128xf32, #tpu.memory_space<vmem>>) attributes {dimension_semantics = [#tpu.dimension_semantics<parallel>], iteration_bounds = array<i64: 1>, scalar_prefetch = 0 : i64, scratch_operands = 0 : i64, tpu.core_type = #tpu.core_type<tc>, window_params = [{transform_indices = @transform_0, window_bounds = array<i64: 16, 128>}, {pipeline_mode = #tpu.pipeline_mode<synchronous>, transform_indices = @transform_1, window_bounds = array<i64: 128, 128>}, {pipeline_mode = #tpu.pipeline_mode<synchronous>, transform_indices = @transform_2, window_bounds = array<i64: 1, 128>}, {pipeline_mode = #tpu.pipeline_mode<synchronous>, transform_indices = @transform_3, window_bounds = array<i64: 128, 128>}, {pipeline_mode = #tpu.pipeline_mode<synchronous>, transform_indices = @transform_4, window_bounds = array<i64: 1, 128>}, {transform_indices = @transform_5, window_bounds = array<i64: 16, 128>}]} {
    %c0 = arith.constant 0 : index
    %c0_0 = arith.constant 0 : index
    %0 = vector.load %arg1[%c0, %c0_0] : memref<16x128xf32, #tpu.memory_space<vmem>>, vector<16x128xf32>
    %c0_1 = arith.constant 0 : index
    %c0_2 = arith.constant 0 : index
    %1 = vector.load %arg2[%c0_1, %c0_2] : memref<128x128xf32, #tpu.memory_space<vmem>>, vector<128x128xf32>
    %cst = arith.constant dense<0.000000e+00> : vector<16x128xf32>
    %2 = tpu.matmul %0, %1, %cst {dimension_numbers = #tpu.dot_dimension_numbers<[1], [0], [0], [1], [0, 0, 1, 1], [], []>} : vector<16x128xf32>, vector<128x128xf32>, vector<16x128xf32> -> vector<16x128xf32>
    %c0_3 = arith.constant 0 : index
    %c0_4 = arith.constant 0 : index
    %3 = vector.load %arg3[%c0_3, %c0_4] : memref<1x128xf32, #tpu.memory_space<vmem>>, vector<1x128xf32>
    %4 = vector.broadcast %3 : vector<1x128xf32> to vector<16x128xf32>
    %5 = arith.addf %2, %4 : vector<16x128xf32>
    %cst_5 = arith.constant 0.000000e+00 : f32
    %6 = vector.broadcast %cst_5 : f32 to vector<16x128xf32>
    %7 = arith.maximumf %5, %6 : vector<16x128xf32>
    %c0_6 = arith.constant 0 : index
    %c0_7 = arith.constant 0 : index
    %8 = vector.load %arg4[%c0_6, %c0_7] : memref<128x128xf32, #tpu.memory_space<vmem>>, vector<128x128xf32>
    %cst_8 = arith.constant dense<0.000000e+00> : vector<16x128xf32>
    %9 = tpu.matmul %7, %8, %cst_8 {dimension_numbers = #tpu.dot_dimension_numbers<[1], [0], [0], [1], [0, 0, 1, 1], [], []>} : vector<16x128xf32>, vector<128x128xf32>, vector<16x128xf32> -> vector<16x128xf32>
    %c0_9 = arith.constant 0 : index
    %c0_10 = arith.constant 0 : index
    %10 = vector.load %arg5[%c0_9, %c0_10] : memref<1x128xf32, #tpu.memory_space<vmem>>, vector<1x128xf32>
    %11 = vector.broadcast %10 : vector<1x128xf32> to vector<16x128xf32>
    %12 = arith.addf %9, %11 : vector<16x128xf32>
    %13 = arith.negf %12 : vector<16x128xf32>
    %14 = math.exp %13 : vector<16x128xf32>
    %cst_11 = arith.constant 1.000000e+00 : f32
    %15 = vector.broadcast %cst_11 : f32 to vector<16x128xf32>
    %16 = arith.addf %15, %14 : vector<16x128xf32>
    %17 = arith.divf %15, %16 : vector<16x128xf32>
    %c0_12 = arith.constant 0 : index
    %c0_13 = arith.constant 0 : index
    %18 = vector.load %arg1[%c0_12, %c0_13] : memref<16x128xf32, #tpu.memory_space<vmem>>, vector<16x128xf32>
    %19 = arith.mulf %18, %17 : vector<16x128xf32>
    %c0_14 = arith.constant 0 : index
    %c0_15 = arith.constant 0 : index
    %20 = vector.load %arg6[%c0_14, %c0_15] : memref<16x128xf32, #tpu.memory_space<vmem>>, vector<16x128xf32>
    tpu.vector_store %arg6[%c0_14, %c0_15], %19 {strides = array<i32>} : memref<16x128xf32, #tpu.memory_space<vmem>>, vector<16x128xf32>,
    return
  }
  func.func @transform_0(%arg0: i32) -> (i32, i32) {
    %c0_i32 = arith.constant 0 : i32
    %c0_i32_0 = arith.constant 0 : i32
    return %arg0, %c0_i32 : i32, i32
  }
  func.func @transform_1(%arg0: i32) -> (i32, i32) {
    %c0_i32 = arith.constant 0 : i32
    %c0_i32_0 = arith.constant 0 : i32
    %c0_i32_1 = arith.constant 0 : i32
    return %c0_i32, %c0_i32_0 : i32, i32
  }
  func.func @transform_2(%arg0: i32) -> (i32, i32) {
    %c0_i32 = arith.constant 0 : i32
    %c0_i32_0 = arith.constant 0 : i32
    %c0_i32_1 = arith.constant 0 : i32
    return %c0_i32, %c0_i32_0 : i32, i32
  }
  func.func @transform_3(%arg0: i32) -> (i32, i32) {
    %c0_i32 = arith.constant 0 : i32
    %c0_i32_0 = arith.constant 0 : i32
    %c0_i32_1 = arith.constant 0 : i32
    return %c0_i32, %c0_i32_0 : i32, i32
  }
  func.func @transform_4(%arg0: i32) -> (i32, i32) {
    %c0_i32 = arith.constant 0 : i32
    %c0_i32_0 = arith.constant 0 : i32
    %c0_i32_1 = arith.constant 0 : i32
    return %c0_i32, %c0_i32_0 : i32, i32
  }
  func.func @transform_5(%arg0: i32) -> (i32, i32) {
    %c0_i32 = arith.constant 0 : i32
    %c0_i32_0 = arith.constant 0 : i32
    return %arg0, %c0_i32 : i32, i32
  }
}

</mosaic_0001>

<llo_original>
// kernel: self_attention_lin.1
$region0: #{self_attention_lin.1}
  #allocation0 [shape = 'u32[]', space=smem, size = 0x4, offset = 0x4, fixed_abs, tag = 'smem constant byte address 0x4 - core index']
  #allocation1 [shape = 'u32[72,128]{1,0:T(1,128)}', space=vmem, size = 0x9000, scoped, tag = 'internal scratch']
  %s0 = inlined_call_operand.vmem [shape: f32[16,128], index: 0, kind: input, shape index: {}]
  %s1 = inlined_call_operand.vmem [shape: f32[128,128], index: 1, kind: input, shape index: {}]
  %s2 = inlined_call_operand.vmem [shape: f32[1,128], index: 2, kind: input, shape index: {}]
  %s3 = inlined_call_operand.vmem [shape: f32[128,128], index: 3, kind: input, shape index: {}]
  %s4 = inlined_call_operand.vmem [shape: f32[1,128], index: 4, kind: input, shape index: {}]
  %s5 = inlined_call_operand.vmem [shape: f32[16,128], index: 5, kind: output, shape index: {}]
  %s6 = sld [smem:[#allocation0]]
  $region30: #{self_attention_lin.1} parent=0
    _
  %s8 = ssub.s32 1, %s6
  %s9 = scalar_select 0, %s8, %s6
  // Predicated region
  $region2: #{self_attention_lin.1} parent=0 // pred_check
    _
  $region3: #{self_attention_lin.1} parent=0 // pred_check_branch
    %11 = sbr.rel (0) target = $region5
  $region4: #{self_attention_lin.1} parent=0 // pred_region
    _
  $region5: #{self_attention_lin.1} parent=0 // pred_fallthru
    _
  // Predicated region
  $region6: #{self_attention_lin.1} parent=0 // pred_check
    _
  $region7: #{self_attention_lin.1} parent=0 // pred_check_branch
    %13 = sbr.rel (0) target = $region9
  $region8: #{self_attention_lin.1} parent=0 // pred_region
    _
  $region9: #{self_attention_lin.1} parent=0 // pred_fallthru
    _
  // Predicated region
  $region10: #{self_attention_lin.1} parent=0 // pred_check
    _
  $region11: #{self_attention_lin.1} parent=0 // pred_check_branch
    %15 = sbr.rel (0) target = $region13
  $region12: #{self_attention_lin.1} parent=0 // pred_region
    _
  $region13: #{self_attention_lin.1} parent=0 // pred_fallthru
    _
  // Predicated region
  $region14: #{self_attention_lin.1} parent=0 // pred_check
    _
  $region15: #{self_attention_lin.1} parent=0 // pred_check_branch
    %17 = sbr.rel (0) target = $region17
  $region16: #{self_attention_lin.1} parent=0 // pred_region
    _
  $region17: #{self_attention_lin.1} parent=0 // pred_fallthru
    _
  // Predicated region
  $region18: #{self_attention_lin.1} parent=0 // pred_check
    _
  $region19: #{self_attention_lin.1} parent=0 // pred_check_branch
    %19 = sbr.rel (0) target = $region21
  $region20: #{self_attention_lin.1} parent=0 // pred_region
    _
  $region21: #{self_attention_lin.1} parent=0 // pred_fallthru
    _
  %v20 = vld [vmem:[%s0] sm:$0xff]
  %v21 = vld [vmem:[%s0 + $0x8] sm:$0xff]
  %v22 = vld [vmem:[%s1] sm:$0xff]
  %v23 = vld [vmem:[%s1 + $0x8] sm:$0xff]
  %v24 = vld [vmem:[%s1 + $0x10] sm:$0xff]
  %v25 = vld [vmem:[%s1 + $0x18] sm:$0xff]
  %v26 = vld [vmem:[%s1 + $0x20] sm:$0xff]
  %v27 = vld [vmem:[%s1 + $0x28] sm:$0xff]
  %v28 = vld [vmem:[%s1 + $0x30] sm:$0xff]
  %v29 = vld [vmem:[%s1 + $0x38] sm:$0xff]
  %v30 = vld [vmem:[%s1 + $0x40] sm:$0xff]
  %v31 = vld [vmem:[%s1 + $0x48] sm:$0xff]
  %v32 = vld [vmem:[%s1 + $0x50] sm:$0xff]
  %v33 = vld [vmem:[%s1 + $0x58] sm:$0xff]
  %v34 = vld [vmem:[%s1 + $0x60] sm:$0xff]
  %v35 = vld [vmem:[%s1 + $0x68] sm:$0xff]
  %v36 = vld [vmem:[%s1 + $0x70] sm:$0xff]
  %v37 = vld [vmem:[%s1 + $0x78] sm:$0xff]
  %v38 = vld [vmem:[%s2] sm:$0x1]
  %v40 = vperm.slane %v38, 0
  %42 = vmatpush.msra.mxu0 %v37
  %43 = vmatpush.msra.mxu0 %v36
  %44 = vmatpush.msra.mxu0 %v35
  %45 = vmatpush.msra.mxu0 %v34
  %46 = vmatpush.msra.mxu0 %v33
  %47 = vmatpush.msra.mxu0 %v32
  %48 = vmatpush.msra.mxu0 %v31
  %49 = vmatpush.msra.mxu0 %v30
  %50 = vmatpush.msra.mxu0 %v29
  %51 = vmatpush.msra.mxu0 %v28
  %52 = vmatpush.msra.mxu0 %v27
  %53 = vmatpush.msra.mxu0 %v26
  %54 = vmatpush.msra.mxu0 %v25
  %55 = vmatpush.msra.mxu0 %v24
  %56 = vmatpush.msra.mxu0 %v23
  %57 = vmatpush.msra.mxu0 %v22
  %58 = vmatmul.f32.gmra.mxu0 %v20
  %v59 = vpop.f32.mrf.mxu0
  %v60 = vadd.f32 %v40, %v59
  %61 = vmatmul.f32.gmra.mxu0 %v21
  %v62 = vpop.f32.mrf.mxu0
  %v63 = vadd.f32 %v40, %v62
  %64 = vdwg.mxu0
  %v65 = vmax.f32 %v60, 0.0
  %v66 = vmax.f32 %v63, 0.0
  %v67 = vld [vmem:[%s3] sm:$0xff]
  %v68 = vld [vmem:[%s3 + $0x8] sm:$0xff]
  %v69 = vld [vmem:[%s3 + $0x10] sm:$0xff]
  %v70 = vld [vmem:[%s3 + $0x18] sm:$0xff]
  %v71 = vld [vmem:[%s3 + $0x20] sm:$0xff]
  %v72 = vld [vmem:[%s3 + $0x28] sm:$0xff]
  %v73 = vld [vmem:[%s3 + $0x30] sm:$0xff]
  %v74 = vld [vmem:[%s3 + $0x38] sm:$0xff]
  %v75 = vld [vmem:[%s3 + $0x40] sm:$0xff]
  %v76 = vld [vmem:[%s3 + $0x48] sm:$0xff]
  %v77 = vld [vmem:[%s3 + $0x50] sm:$0xff]
  %v78 = vld [vmem:[%s3 + $0x58] sm:$0xff]
  %v79 = vld [vmem:[%s3 + $0x60] sm:$0xff]
  %v80 = vld [vmem:[%s3 + $0x68] sm:$0xff]
  %v81 = vld [vmem:[%s3 + $0x70] sm:$0xff]
  %v82 = vld [vmem:[%s3 + $0x78] sm:$0xff]
  %v83 = vld [vmem:[%s4] sm:$0x1]
  %v85 = vperm.slane %v83, 0
  %87 = vmatpush.msra.mxu0 %v82
  %88 = vmatpush.msra.mxu0 %v81
  %89 = vmatpush.msra.mxu0 %v80
  %90 = vmatpush.msra.mxu0 %v79
  %91 = vmatpush.msra.mxu0 %v78
  %92 = vmatpush.msra.mxu0 %v77
  %93 = vmatpush.msra.mxu0 %v76
  %94 = vmatpush.msra.mxu0 %v75
  %95 = vmatpush.msra.mxu0 %v74
  %96 = vmatpush.msra.mxu0 %v73
  %97 = vmatpush.msra.mxu0 %v72
  %98 = vmatpush.msra.mxu0 %v71
  %99 = vmatpush.msra.mxu0 %v70
  %100 = vmatpush.msra.mxu0 %v69
  %101 = vmatpush.msra.mxu0 %v68
  %102 = vmatpush.msra.mxu0 %v67
  %103 = vmatmul.f32.gmra.mxu0 %v65
  %v104 = vpop.f32.mrf.mxu0
  %v105 = vadd.f32 %v85, %v104
  %106 = vmatmul.f32.gmra.mxu0 %v66
  %v107 = vpop.f32.mrf.mxu0
  %v108 = vadd.f32 %v85, %v107
  %109 = vdwg.mxu0
  %v110 = vxor.u32 %v105, 2147483648
  %v111 = vxor.u32 %v108, 2147483648
  %v112 = vmul.f32 %v110, 1.442695
  %v113 = vpow.pop %v112
  %v114 = vmul.f32 %v111, 1.442695
  %v115 = vpow.pop %v114
  %v116 = vadd.f32 %v113, 1.0
  %v117 = vadd.f32 %v115, 1.0
  %v118 = vrcp.pop %v116
  %v119 = vmul.f32 %v116, %v118
  %v120 = vsub.f32 1.0, %v119
  %v121 = vmul.f32 %v118, %v120
  %v122 = vadd.f32 %v118, %v121
  %vm123 = vweird.f32 %v116
  %vm124 = vweird.f32 %v118
  %vm125 = vmor %vm123, %vm124
  %v126 = vsel %vm125, %v118, %v122
  %v127 = vand.u32 2147483647, %v116
  %vm128 = vcmp.eq.f32.partialorder %v127, 8.507059e+37
  %v129 = vand.u32 %v116, 2147483648
  %v130 = vor.u32 1.1754944e-38, %v129
  %v131 = vsel %vm128, %v130, %v126
  %v132 = vmul.f32 1.0, %v131
  %v133 = vrcp.pop %v117
  %v134 = vmul.f32 %v117, %v133
  %v135 = vsub.f32 1.0, %v134
  %v136 = vmul.f32 %v133, %v135
  %v137 = vadd.f32 %v133, %v136
  %vm138 = vweird.f32 %v117
  %vm139 = vweird.f32 %v133
  %vm140 = vmor %vm138, %vm139
  %v141 = vsel %vm140, %v133, %v137
  %v142 = vand.u32 2147483647, %v117
  %vm143 = vcmp.eq.f32.partialorder %v142, 8.507059e+37
  %v144 = vand.u32 %v117, 2147483648
  %v145 = vor.u32 1.1754944e-38, %v144
  %v146 = vsel %vm143, %v145, %v141
  %v147 = vmul.f32 1.0, %v146
  %v148 = vmul.f32 %v20, %v132
  %v149 = vmul.f32 %v21, %v147
  %150 = vst [vmem:[%s5] sm:$0xff] %v148
  %151 = vst [vmem:[%s5 + $0x8] sm:$0xff] %v149
  // Predicated region
  $region22: #{self_attention_lin.1} parent=0 // pred_check
    _
  $region23: #{self_attention_lin.1} parent=0 // pred_check_branch
    %153 = sbr.rel (0) target = $region25
  $region24: #{self_attention_lin.1} parent=0 // pred_region
    _
  $region25: #{self_attention_lin.1} parent=0 // pred_fallthru
    _
  // Predicated region
  $region26: #{self_attention_lin.1} parent=0 // pred_check
    _
  $region27: #{self_attention_lin.1} parent=0 // pred_check_branch
    %155 = sbr.rel (0) target = $region29
  $region28: #{self_attention_lin.1} parent=0 // pred_region
    _
  $region29: #{self_attention_lin.1} parent=0 // pred_fallthru
    _

</llo_original>
